<compile_context>
chip_gen: v7x
topology: tpu7x:2x2x1
jax: 0.10.0
libtpu: 0.0.40
codegen_flags: <defaults>
</compile_context>

<pallas_src>
import jax
import jax.numpy as jnp
from jax.experimental import pallas as pl
from jax.experimental.pallas import tpu as pltpu


def _concat_conv1x1_kernel(x_ref, y_ref, wx_ref, wy_ref, b_ref, o_ref):
    # x_ref: (Bt, Cx, T)   y_ref: (Bt, Cy, T)
    # wx_ref: (Cout, Cx)   wy_ref: (Cout, Cy)   b_ref: (Cout, 1)
    # o_ref: (Bt, Cout, T)
    wx = wx_ref[...]
    wy = wy_ref[...]
    b = b_ref[...].astype(jnp.float32)          # (Cout, 1) broadcasts over lanes
    for i in range(x_ref.shape[0]):             # static unroll over the batch block
        acc = jnp.dot(wx, x_ref[i], preferred_element_type=jnp.float32)
        acc = acc + jnp.dot(wy, y_ref[i], preferred_element_type=jnp.float32)
        o_ref[i] = (acc + b).astype(o_ref.dtype)


def _vmem_capacity_bytes():
    """Physical VMEM per TensorCore; conservative fallback if query fails."""
    try:
        return int(pltpu.get_tpu_info().vmem_capacity_bytes)
    except Exception:
        return 64 * 1024 * 1024   # safe for v7x; an under-estimate for v5e/v6e


def _choose_tiling(N, Cx, Cy, Cout, HW, in_isz, out_isz, w_isz, budget_bytes,
                   target_step_bytes=2 * 1024 * 1024, max_lanes=64 * 1024,
                   max_bt=16):
    """Pick (Bt, T): batch-block size and spatial-tile size.

    VMEM model per grid step:
      x/y tiles (double-buffered)  : Bt*T * 2*(Cx+Cy)*in_isz
      out tile  (double-buffered)  : Bt*T * 2*Cout*out_isz
      f32 accumulator temporaries  : T * 2*Cout*4
      weights + bias (double-buf)  : 2*(Cout*(Cx+Cy)*w_isz + Cout*4)
    """
    per_bt_lane = 2 * (Cx + Cy) * in_isz + 2 * Cout * out_isz
    acc_per_lane = 2 * Cout * 4
    fixed = 2 * (Cout * (Cx + Cy) * w_isz + Cout * 4)
    avail = max(budget_bytes - fixed, 1 << 20)

    # --- spatial tile T: as large as the budget allows, lane-aligned ---
    t_max = (avail // (per_bt_lane + acc_per_lane)) // 128 * 128
    t_max = max(128, min(int(t_max), max_lanes))
    if HW <= t_max:
        T = HW                                     # full spatial extent, no tail
    else:
        T = min(t_max, pl.cdiv(HW, 128) * 128)
    # Keep >=2 grid steps so both TensorCores on dual-TC chips (v7x) get work.
    if N == 1 and T == HW and HW >= 256:
        T = pl.cdiv(pl.cdiv(HW, 2), 128) * 128
    n_spatial = pl.cdiv(HW, T)

    # --- batch block Bt: only useful when the whole spatial extent fits ---
    Bt = 1
    if n_spatial == 1 and N > 1:
        hbm_per_bt_lane = (Cx + Cy) * in_isz + Cout * out_isz
        bt_vmem = max(1, int((avail - T * acc_per_lane) // (T * per_bt_lane)))
        bt_want = max(1, -(-target_step_bytes // (T * hbm_per_bt_lane)))
        bt_grid = max(1, N // 2)                   # >=2 grid steps along batch
        bt_cap = min(N, max_bt, bt_vmem, bt_want, bt_grid)
        # Largest divisor of N not exceeding the cap (avoids ragged batch tail).
        Bt = max(d for d in range(1, bt_cap + 1) if N % d == 0)
    return Bt, T


def concat_conv2d(x, y, weight, bias, out_dtype=None):
    """Equivalent of: Conv2d(Cx+Cy, Cout, kernel_size=1)(cat([x, y], dim=1)).

    x: (N, Cx, H, W), y: (N, Cy, H, W)   [NCHW, like PyTorch]
    weight: (Cout, Cx + Cy)   (the (Cout, Cin, 1, 1) conv weight, squeezed)
    bias:   (Cout,)
    returns: (N, Cout, H, W)
    """
    N, Cx, H, W = x.shape
    Ny, Cy, Hy, Wy = y.shape
    assert (N, H, W) == (Ny, Hy, Wy), "x and y must share batch/spatial dims"
    assert x.dtype == y.dtype, "x and y must have the same dtype"
    Cout, Cin = weight.shape
    assert Cin == Cx + Cy, "conv in_channels must equal Cx + Cy"
    HW = H * W
    out_dtype = x.dtype if out_dtype is None else out_dtype

    # Free reshapes (contiguous merge of trailing dims) — no HBM copies.
    x3 = x.reshape(N, Cx, HW)
    y3 = y.reshape(N, Cy, HW)
    wx = weight[:, :Cx]            # (Cout, Cx)
    wy = weight[:, Cx:]            # (Cout, Cy)
    b2 = bias.reshape(Cout, 1)     # broadcasts over the spatial (lane) axis

    # Generation-aware VMEM limits: ~75% of capacity, tile budget ~75% of that.
    vmem_cap = _vmem_capacity_bytes()                      # 128 MiB v5e/v6e, 64 MiB v7x
    vmem_limit = min(vmem_cap * 3 // 4, 100 * 1024 * 1024)
    tile_budget = vmem_limit * 3 // 4

    Bt, T = _choose_tiling(
        N, Cx, Cy, Cout, HW,
        in_isz=jnp.dtype(x.dtype).itemsize,
        out_isz=jnp.dtype(out_dtype).itemsize,
        w_isz=jnp.dtype(weight.dtype).itemsize,
        budget_bytes=tile_budget,
    )
    grid = (N // Bt, pl.cdiv(HW, T))   # Bt divides N; spatial tail is masked

    out3 = pl.pallas_call(
        _concat_conv1x1_kernel,
        out_shape=jax.ShapeDtypeStruct((N, Cout, HW), out_dtype),
        grid_spec=pltpu.PrefetchScalarGridSpec(
            num_scalar_prefetch=0,
            grid=grid,
            in_specs=[
                pl.BlockSpec((Bt, Cx, T), lambda b, s: (b, 0, s)),
                pl.BlockSpec((Bt, Cy, T), lambda b, s: (b, 0, s)),
                pl.BlockSpec((Cout, Cx), lambda b, s: (0, 0)),
                pl.BlockSpec((Cout, Cy), lambda b, s: (0, 0)),
                pl.BlockSpec((Cout, 1), lambda b, s: (0, 0)),
            ],
            out_specs=pl.BlockSpec((Bt, Cout, T), lambda b, s: (b, 0, s)),
        ),
        compiler_params=pltpu.CompilerParams(
            dimension_semantics=("parallel", "parallel"),
            vmem_limit_bytes=int(vmem_limit),
        ),
    )(x3, y3, wx, wy, b2)

    # Free reshape back: (N, Cout, H*W) -> (N, Cout, H, W)
    return out3.reshape(N, Cout, H, W)


if __name__ == "__main__":
    # Small deterministic example consistent with the module
    # (conv in_channels must equal Cx + Cy).
    N, Cx, Cy, H, W = 2, 4, 4, 16, 16
    Cin = Cx + Cy
    Cout = 8

    key = jax.random.PRNGKey(0)
    kx, ky, kw, kb = jax.random.split(key, 4)

    x = jax.random.normal(kx, (N, Cx, H, W), dtype=jnp.float32)
    y = jax.random.normal(ky, (N, Cy, H, W), dtype=jnp.float32)

    # Deterministic Conv2d-style init (uniform in +-1/sqrt(fan_in)), kernel_size=1.
    fan_in = Cin * 1 * 1
    bound = 1.0 / (fan_in ** 0.5)
    weight = jax.random.uniform(kw, (Cout, Cin), jnp.float32, -bound, bound)
    bias = jax.random.uniform(kb, (Cout,), jnp.float32, -bound, bound)

    out = jax.block_until_ready(concat_conv2d(x, y, weight, bias))

    # Pure-JAX reference: concat on channel dim + 1x1 conv.
    cat = jnp.concatenate([x, y], axis=1)                       # (N, Cin, H, W)
    ref = jnp.einsum("nchw,oc->nohw", cat, weight) + bias[None, :, None, None]

    assert out.shape == (N, Cout, H, W)
    assert jnp.allclose(out, ref, atol=1e-5, rtol=1e-5)
    print("KERNEL_OK")
</pallas_src>

<mosaic_0001>
module attributes {stable_mosaic.version = 11 : i64} {
  func.func @_concat_conv1x1_kernel(%arg0: i32, %arg1: i32, %arg2: memref<1x4x256xf32, #tpu.memory_space<vmem>>, %arg3: memref<1x4x256xf32, #tpu.memory_space<vmem>>, %arg4: memref<8x4xf32, #tpu.memory_space<vmem>>, %arg5: memref<8x4xf32, #tpu.memory_space<vmem>>, %arg6: memref<8x1xf32, #tpu.memory_space<vmem>>, %arg7: memref<1x8x256xf32, #tpu.memory_space<vmem>>) attributes {dimension_semantics = [#tpu.dimension_semantics<parallel>, #tpu.dimension_semantics<parallel>], iteration_bounds = array<i64: 2, 1>, scalar_prefetch = 0 : i64, scratch_operands = 0 : i64, tpu.core_type = #tpu.core_type<tc>, window_params = [{transform_indices = @transform_0, window_bounds = array<i64: 1, 4, 256>}, {transform_indices = @transform_1, window_bounds = array<i64: 1, 4, 256>}, {pipeline_mode = #tpu.pipeline_mode<synchronous>, transform_indices = @transform_2, window_bounds = array<i64: 8, 4>}, {pipeline_mode = #tpu.pipeline_mode<synchronous>, transform_indices = @transform_3, window_bounds = array<i64: 8, 4>}, {pipeline_mode = #tpu.pipeline_mode<synchronous>, transform_indices = @transform_4, window_bounds = array<i64: 8, 1>}, {transform_indices = @transform_5, window_bounds = array<i64: 1, 8, 256>}]} {
    %c0 = arith.constant 0 : index
    %c0_0 = arith.constant 0 : index
    %0 = vector.load %arg4[%c0, %c0_0] : memref<8x4xf32, #tpu.memory_space<vmem>>, vector<8x4xf32>
    %c0_1 = arith.constant 0 : index
    %c0_2 = arith.constant 0 : index
    %1 = vector.load %arg5[%c0_1, %c0_2] : memref<8x4xf32, #tpu.memory_space<vmem>>, vector<8x4xf32>
    %c0_3 = arith.constant 0 : index
    %c0_4 = arith.constant 0 : index
    %2 = vector.load %arg6[%c0_3, %c0_4] : memref<8x1xf32, #tpu.memory_space<vmem>>, vector<8x1xf32>
    %c0_5 = arith.constant 0 : index
    %c0_6 = arith.constant 0 : index
    %c0_7 = arith.constant 0 : index
    %3 = vector.load %arg2[%c0_5, %c0_6, %c0_7] : memref<1x4x256xf32, #tpu.memory_space<vmem>>, vector<1x4x256xf32>
    %4 = vector.shape_cast %3 : vector<1x4x256xf32> to vector<4x256xf32>
    %cst = arith.constant dense<0.000000e+00> : vector<8x256xf32>
    %5 = tpu.matmul %0, %4, %cst {dimension_numbers = #tpu.dot_dimension_numbers<[1], [0], [0], [1], [0, 0, 1, 1], [], []>} : vector<8x4xf32>, vector<4x256xf32>, vector<8x256xf32> -> vector<8x256xf32>
    %c0_8 = arith.constant 0 : index
    %c0_9 = arith.constant 0 : index
    %c0_10 = arith.constant 0 : index
    %6 = vector.load %arg3[%c0_8, %c0_9, %c0_10] : memref<1x4x256xf32, #tpu.memory_space<vmem>>, vector<1x4x256xf32>
    %7 = vector.shape_cast %6 : vector<1x4x256xf32> to vector<4x256xf32>
    %cst_11 = arith.constant dense<0.000000e+00> : vector<8x256xf32>
    %8 = tpu.matmul %1, %7, %cst_11 {dimension_numbers = #tpu.dot_dimension_numbers<[1], [0], [0], [1], [0, 0, 1, 1], [], []>} : vector<8x4xf32>, vector<4x256xf32>, vector<8x256xf32> -> vector<8x256xf32>
    %9 = arith.addf %5, %8 : vector<8x256xf32>
    %10 = vector.broadcast %2 : vector<8x1xf32> to vector<8x256xf32>
    %11 = arith.addf %9, %10 : vector<8x256xf32>
    %c0_12 = arith.constant 0 : index
    %c0_13 = arith.constant 0 : index
    %c0_14 = arith.constant 0 : index
    %12 = vector.load %arg7[%c0_12, %c0_13, %c0_14] : memref<1x8x256xf32, #tpu.memory_space<vmem>>, vector<1x8x256xf32>
    %13 = vector.shape_cast %12 : vector<1x8x256xf32> to vector<8x256xf32>
    %14 = vector.shape_cast %11 : vector<8x256xf32> to vector<1x8x256xf32>
    tpu.vector_store %arg7[%c0_12, %c0_13, %c0_14], %14 {strides = array<i32>} : memref<1x8x256xf32, #tpu.memory_space<vmem>>, vector<1x8x256xf32>,
    return
  }
  func.func @transform_0(%arg0: i32, %arg1: i32) -> (i32, i32, i32) {
    %c0_i32 = arith.constant 0 : i32
    %c0_i32_0 = arith.constant 0 : i32
    return %arg0, %c0_i32, %arg1 : i32, i32, i32
  }
  func.func @transform_1(%arg0: i32, %arg1: i32) -> (i32, i32, i32) {
    %c0_i32 = arith.constant 0 : i32
    %c0_i32_0 = arith.constant 0 : i32
    return %arg0, %c0_i32, %arg1 : i32, i32, i32
  }
  func.func @transform_2(%arg0: i32, %arg1: i32) -> (i32, i32) {
    %c0_i32 = arith.constant 0 : i32
    %c0_i32_0 = arith.constant 0 : i32
    %c0_i32_1 = arith.constant 0 : i32
    return %c0_i32, %c0_i32_0 : i32, i32
  }
  func.func @transform_3(%arg0: i32, %arg1: i32) -> (i32, i32) {
    %c0_i32 = arith.constant 0 : i32
    %c0_i32_0 = arith.constant 0 : i32
    %c0_i32_1 = arith.constant 0 : i32
    return %c0_i32, %c0_i32_0 : i32, i32
  }
  func.func @transform_4(%arg0: i32, %arg1: i32) -> (i32, i32) {
    %c0_i32 = arith.constant 0 : i32
    %c0_i32_0 = arith.constant 0 : i32
    %c0_i32_1 = arith.constant 0 : i32
    return %c0_i32, %c0_i32_0 : i32, i32
  }
  func.func @transform_5(%arg0: i32, %arg1: i32) -> (i32, i32, i32) {
    %c0_i32 = arith.constant 0 : i32
    %c0_i32_0 = arith.constant 0 : i32
    return %arg0, %c0_i32, %arg1 : i32, i32, i32
  }
}

</mosaic_0001>

<llo_original>
// kernel: tpu_custom_call.1
$region0: #{tpu_custom_call.1}
  #allocation0 [shape = 'u32[]', space=smem, size = 0x4, offset = 0x4, fixed_abs, tag = 'smem constant byte address 0x4 - core index']
  #allocation1 [shape = 'u32[144,128]{1,0:T(1,128)}', space=vmem, size = 0x12000, scoped, tag = 'internal scratch']
  %s0 = inlined_call_operand.vmem [shape: f32[2,4,256], index: 0, kind: input, shape index: {}]
  %s1 = inlined_call_operand.vmem [shape: f32[2,4,256], index: 1, kind: input, shape index: {}]
  %s2 = inlined_call_operand.vmem [shape: f32[8,4], index: 2, kind: input, shape index: {}]
  %s3 = inlined_call_operand.vmem [shape: f32[8,4], index: 3, kind: input, shape index: {}]
  %s4 = inlined_call_operand.vmem [shape: f32[8,1], index: 4, kind: input, shape index: {}]
  %s5 = inlined_call_operand.hbm [shape: f32[2,8,256], index: 5, kind: output, shape index: {}]
  %s6 = sld [smem:[#allocation0]]
  $region53: #{tpu_custom_call.1} parent=0
    _
  %s8 = ssub.s32 1, %s6
  %s9 = scalar_select 0, %s8, %s6
  $region1: #{tpu_custom_call.1} parent=0
    #allocation2 [shape = 'u8[16384]{0}', space=vmem, size = 0x4000, scoped, tag = 'output window, operand 0']
    #allocation3 [shape = 's32[2]{0}', space=sflag, size = 0x8, scoped, tag = 'scoped memory for tpu_custom_call.1']
    %10 = vsyncpa [#allocation3], 0
    %s11 = scalar_lea.sflag [#allocation3], 1
    %12 = vsyncpa %s11, 0
    loop: start=0, step=1, limit=4
    $region2: #{tpu_custom_call.1} parent=1 // loop_pre_header
      _
    $region3: #{tpu_custom_call.1} parent=1 // loop_header
      %s14 = sphi 0, %s18
      %p15 = scmp.ge.s32.totalorder %s14, 4
      %s21 = sphi 0, %s33
      %s22 = sphi 0, %s29
      %s23 = sphi 0, %s21
      %s24 = sphi 0, %s22
      %s25 = sphi 0, %s23
      %s26 = sphi 0, %s24
      %s38 = sphi 0, %s40
      %s41 = sphi 0, %s38
      %s42 = sphi 0, %s41
      %s58 = sphi 0, %s42
      %s66 = sphi 0, %s68
      %s69 = sphi 0, %s66
      %s70 = sphi 0, %s69
      %s86 = sphi 0, %s70
      %s90 = sphi 0, %s90
      %s92 = sphi 0, %s90
      %s93 = sphi 0, %s92
      %s107 = sphi 0, %s93
      %s111 = sphi 0, %s111
      %s113 = sphi 0, %s111
      %s114 = sphi 0, %s113
      %s128 = sphi 0, %s114
      %s132 = sphi 0, %s132
      %s134 = sphi 0, %s132
      %s135 = sphi 0, %s134
      %s149 = sphi 0, %s135
      %s157 = sphi 0, %s159
      %s160 = sphi 0, %s157
      %s161 = sphi 0, %s160
      %s177 = sphi 0, %s161
    $region4: #{tpu_custom_call.1} parent=1 // loop_header_branch
      %17 = sbr.rel (%p15) target = $region8
    $region5: #{tpu_custom_call.1} parent=1 // loop_body
      %s19 = ssub.s32 %s14, 1
      %s20 = ssub.s32 %s14, 2
      %s27 = sadd.s32 1, %s22
      %p28 = scmp.ge.s32.totalorder %s27, 1
      %s29 = scalar_select %p28, 0, %s27
      %s30 = sadd.s32 1, %s21
      %s31 = scalar_select %p28, %s30, %s21
      %p32 = scmp.ge.s32.totalorder %s31, 2
      %s33 = scalar_select %p32, 0, %s31
      %s34 = ssub.s32 %s21, %s33
      %s35 = ssub.s32 %s22, %s29
      %s36 = sor.u32 %s34, %s35
      %p37 = scmp.eq.s32.totalorder %s36, 0
      %s39 = sadd.s32 %s38, 1
      %s40 = scalar_select %p37, %s38, %s39
      %p43 = pneg %p37
      %p44 = scmp.eq.s32.totalorder %s14, 1
      %p45 = por %p43, %p44
      %p46 = scmp.ne.s32.totalorder %s38, %s41
      %p47 = scmp.eq.s32.totalorder %s14, 0
      %p48 = por %p46, %p47
      %p49 = scmp.ne.s32.totalorder %s38, %s41
      %p50 = scmp.eq.s32.totalorder %s19, 1
      %p51 = por %p49, %p50
      %p52 = scmp.ne.s32.totalorder %s41, %s42
      %p53 = scmp.eq.s32.totalorder %s19, 0
      %p54 = por %p52, %p53
      %p55 = scmp.ne.s32.totalorder %s41, %s42
      %p56 = scmp.eq.s32.totalorder %s20, 1
      %p57 = por %p55, %p56
      %p59 = scmp.ne.s32.totalorder %s42, %s58
      %p60 = scmp.eq.s32.totalorder %s20, 0
      %p61 = por %p59, %p60
      %s62 = ssub.s32 %s21, %s33
      %s63 = ssub.s32 %s22, %s29
      %s64 = sor.u32 %s62, %s63
      %p65 = scmp.eq.s32.totalorder %s64, 0
      %s67 = sadd.s32 %s66, 1
      %s68 = scalar_select %p65, %s66, %s67
      %p71 = pneg %p65
      %p72 = scmp.eq.s32.totalorder %s14, 1
      %p73 = por %p71, %p72
      %p74 = scmp.ne.s32.totalorder %s66, %s69
      %p75 = scmp.eq.s32.totalorder %s14, 0
      %p76 = por %p74, %p75
      %p77 = scmp.ne.s32.totalorder %s66, %s69
      %p78 = scmp.eq.s32.totalorder %s19, 1
      %p79 = por %p77, %p78
      %p80 = scmp.ne.s32.totalorder %s69, %s70
      %p81 = scmp.eq.s32.totalorder %s19, 0
      %p82 = por %p80, %p81
      %p83 = scmp.ne.s32.totalorder %s69, %s70
      %p84 = scmp.eq.s32.totalorder %s20, 1
      %p85 = por %p83, %p84
      %p87 = scmp.ne.s32.totalorder %s70, %s86
      %p88 = scmp.eq.s32.totalorder %s20, 0
      %p89 = por %p87, %p88
      %s91 = sadd.s32 %s90, 1
      %p94 = scmp.eq.s32.totalorder %s14, 1
      %p95 = scmp.ne.s32.totalorder %s90, %s92
      %p96 = scmp.eq.s32.totalorder %s14, 0
      %p97 = por %p95, %p96
      %p98 = scmp.ne.s32.totalorder %s90, %s92
      %p99 = scmp.eq.s32.totalorder %s19, 1
      %p100 = por %p98, %p99
      %p101 = scmp.ne.s32.totalorder %s92, %s93
      %p102 = scmp.eq.s32.totalorder %s19, 0
      %p103 = por %p101, %p102
      %p104 = scmp.ne.s32.totalorder %s92, %s93
      %p105 = scmp.eq.s32.totalorder %s20, 1
      %p106 = por %p104, %p105
      %p108 = scmp.ne.s32.totalorder %s93, %s107
      %p109 = scmp.eq.s32.totalorder %s20, 0
      %p110 = por %p108, %p109
      %s112 = sadd.s32 %s111, 1
      %p115 = scmp.eq.s32.totalorder %s14, 1
      %p116 = scmp.ne.s32.totalorder %s111, %s113
      %p117 = scmp.eq.s32.totalorder %s14, 0
      %p118 = por %p116, %p117
      %p119 = scmp.ne.s32.totalorder %s111, %s113
      %p120 = scmp.eq.s32.totalorder %s19, 1
      %p121 = por %p119, %p120
      %p122 = scmp.ne.s32.totalorder %s113, %s114
      %p123 = scmp.eq.s32.totalorder %s19, 0
      %p124 = por %p122, %p123
      %p125 = scmp.ne.s32.totalorder %s113, %s114
      %p126 = scmp.eq.s32.totalorder %s20, 1
      %p127 = por %p125, %p126
      %p129 = scmp.ne.s32.totalorder %s114, %s128
      %p130 = scmp.eq.s32.totalorder %s20, 0
      %p131 = por %p129, %p130
      %s133 = sadd.s32 %s132, 1
      %p136 = scmp.eq.s32.totalorder %s14, 1
      %p137 = scmp.ne.s32.totalorder %s132, %s134
      %p138 = scmp.eq.s32.totalorder %s14, 0
      %p139 = por %p137, %p138
      %p140 = scmp.ne.s32.totalorder %s132, %s134
      %p141 = scmp.eq.s32.totalorder %s19, 1
      %p142 = por %p140, %p141
      %p143 = scmp.ne.s32.totalorder %s134, %s135
      %p144 = scmp.eq.s32.totalorder %s19, 0
      %p145 = por %p143, %p144
      %p146 = scmp.ne.s32.totalorder %s134, %s135
      %p147 = scmp.eq.s32.totalorder %s20, 1
      %p148 = por %p146, %p147
      %p150 = scmp.ne.s32.totalorder %s135, %s149
      %p151 = scmp.eq.s32.totalorder %s20, 0
      %p152 = por %p150, %p151
      %s153 = ssub.s32 %s21, %s33
      %s154 = ssub.s32 %s22, %s29
      %s155 = sor.u32 %s153, %s154
      %p156 = scmp.eq.s32.totalorder %s155, 0
      %s158 = sadd.s32 %s157, 1
      %s159 = scalar_select %p156, %s157, %s158
      %p162 = pneg %p156
      %p163 = scmp.eq.s32.totalorder %s14, 1
      %p164 = por %p162, %p163
      %p165 = scmp.ne.s32.totalorder %s157, %s160
      %p166 = scmp.eq.s32.totalorder %s14, 0
      %p167 = por %p165, %p166
      %p168 = scmp.ne.s32.totalorder %s157, %s160
      %p169 = scmp.eq.s32.totalorder %s19, 1
      %p170 = por %p168, %p169
      %p171 = scmp.ne.s32.totalorder %s160, %s161
      %p172 = scmp.eq.s32.totalorder %s19, 0
      %p173 = por %p171, %p172
      %p174 = scmp.ne.s32.totalorder %s160, %s161
      %p175 = scmp.eq.s32.totalorder %s20, 1
      %p176 = por %p174, %p175
      %p178 = scmp.ne.s32.totalorder %s161, %s177
      %p179 = scmp.eq.s32.totalorder %s20, 0
      %p180 = por %p178, %p179
      %p181 = scmp.le.s32.totalorder 1, %s14
      %p182 = scmp.lt.s32.totalorder %s14, 3
      %p183 = pnand %p181, %p182
      %p184 = pneg %p183
      // Predicated region
      $region9: #{tpu_custom_call.1} parent=5 // pred_check
        _
      $region10: #{tpu_custom_call.1} parent=5 // pred_check_branch
        %186 = sbr.rel (%p183) target = $region12
      $region11: #{tpu_custom_call.1} parent=5 // pred_region
        %s187 = ssub.s32 %s14, 1
        // Predicated region
        $region13: #{tpu_custom_call.1} parent=11 // pred_check
          %p188 = pneg %p103
        $region14: #{tpu_custom_call.1} parent=11 // pred_check_branch
          %190 = sbr.rel (%p188) target = $region16
        $region15: #{tpu_custom_call.1} parent=11 // pred_region
          _
        $region16: #{tpu_custom_call.1} parent=11 // pred_fallthru
          _
        // Predicated region
        $region17: #{tpu_custom_call.1} parent=11 // pred_check
          %p191 = pneg %p124
        $region18: #{tpu_custom_call.1} parent=11 // pred_check_branch
          %193 = sbr.rel (%p191) target = $region20
        $region19: #{tpu_custom_call.1} parent=11 // pred_region
          _
        $region20: #{tpu_custom_call.1} parent=11 // pred_fallthru
          _
        // Predicated region
        $region21: #{tpu_custom_call.1} parent=11 // pred_check
          %p194 = pneg %p145
        $region22: #{tpu_custom_call.1} parent=11 // pred_check_branch
          %196 = sbr.rel (%p194) target = $region24
        $region23: #{tpu_custom_call.1} parent=11 // pred_region
          _
        $region24: #{tpu_custom_call.1} parent=11 // pred_fallthru
          _
      $region12: #{tpu_custom_call.1} parent=5 // pred_fallthru
        _
      %p197 = scmp.lt.s32.totalorder %s14, 2
      // Predicated region
      $region25: #{tpu_custom_call.1} parent=5 // pred_check
        %p198 = pneg %p197
      $region26: #{tpu_custom_call.1} parent=5 // pred_check_branch
        %200 = sbr.rel (%p198) target = $region28
      $region27: #{tpu_custom_call.1} parent=5 // pred_region
        // Predicated region
        $region29: #{tpu_custom_call.1} parent=27 // pred_check
          %p201 = pneg %p48
        $region30: #{tpu_custom_call.1} parent=27 // pred_check_branch
          %203 = sbr.rel (%p201) target = $region32
        $region31: #{tpu_custom_call.1} parent=27 // pred_region
          %s204 = smul.u32 2, %s22
          %p205 = scmp.lt.s32.totalorder %s21, 1
          %s206 = scalar_select %p205, %s21, 1
          %p207 = scmp.lt.s32.totalorder %s204, 1
          %s208 = scalar_select %p207, %s204, 1
          %s209 = smul.addr %s206, 2
          %s210 = sadd.s32 %s208, %s209
          %s211 = smul.addr %s210, 4
          %s212 = scalar_lea.vmem %s0, %s211
          %s213 = smul.u32 2, %s22
        $region32: #{tpu_custom_call.1} parent=27 // pred_fallthru
          _
        // Predicated region
        $region33: #{tpu_custom_call.1} parent=27 // pred_check
          %p214 = pneg %p76
        $region34: #{tpu_custom_call.1} parent=27 // pred_check_branch
          %216 = sbr.rel (%p214) target = $region36
        $region35: #{tpu_custom_call.1} parent=27 // pred_region
          %s217 = smul.u32 2, %s22
          %p218 = scmp.lt.s32.totalorder %s21, 1
          %s219 = scalar_select %p218, %s21, 1
          %p220 = scmp.lt.s32.totalorder %s217, 1
          %s221 = scalar_select %p220, %s217, 1
          %s222 = smul.addr %s219, 2
          %s223 = sadd.s32 %s221, %s222
          %s224 = smul.addr %s223, 4
          %s225 = scalar_lea.vmem %s1, %s224
          %s226 = smul.u32 2, %s22
        $region36: #{tpu_custom_call.1} parent=27 // pred_fallthru
          _
      $region28: #{tpu_custom_call.1} parent=5 // pred_fallthru
        _
      %p227 = scmp.le.s32.totalorder 1, %s14
      %p228 = scmp.lt.s32.totalorder %s14, 3
      %p229 = pnand %p227, %p228
      %p230 = pneg %p229
      // Predicated region
      $region37: #{tpu_custom_call.1} parent=5 // pred_check
        _
      $region38: #{tpu_custom_call.1} parent=5 // pred_check_branch
        %232 = sbr.rel (%p229) target = $region40
      $region39: #{tpu_custom_call.1} parent=5 // pred_region
        %s233 = ssub.s32 %s14, 1
        %s234 = smul.u32 2, %s24
        %p235 = scmp.lt.s32.totalorder %s23, 1
        %s236 = scalar_select %p235, %s23, 1
        %p237 = scmp.lt.s32.totalorder %s234, 1
        %s238 = scalar_select %p237, %s234, 1
        %s239 = smul.addr %s236, 2
        %s240 = sadd.s32 %s238, %s239
        %s241 = smul.addr %s240, 4
        %s242 = scalar_lea.vmem %s0, %s241
        %p243 = pneg %p54
        %p244 = pneg %p51
        %s245 = smul.u32 2, %s24
        %p246 = scmp.lt.s32.totalorder %s23, 1
        %s247 = scalar_select %p246, %s23, 1
        %p248 = scmp.lt.s32.totalorder %s245, 1
        %s249 = scalar_select %p248, %s245, 1
        %s250 = smul.addr %s247, 2
        %s251 = sadd.s32 %s249, %s250
        %s252 = smul.addr %s251, 4
        %s253 = scalar_lea.vmem %s1, %s252
        %p254 = pneg %p82
        %p255 = pneg %p79
        %p256 = pneg %p103
        %p257 = pneg %p100
        %p258 = pneg %p124
        %p259 = pneg %p121
        %p260 = pneg %p145
        %p261 = pneg %p142
        %p262 = pneg %p173
        %p263 = pneg %p170
        %s264 = sand.u32 %s160, 1
        %s265 = scalar_lea.sflag [#allocation3], %s264
        %s266 = sand.u32 %s160, 1
        %s267 = smul.addr %s266, 16
        %s268 = scalar_lea.vmem [#allocation2], %s267
        %s269 = smul.u32 2, %s24
        %p270 = scmp.lt.s32.totalorder %s23, 1
        %s271 = scalar_select %p270, %s23, 1
        %p272 = scmp.lt.s32.totalorder %s269, 1
        %s273 = scalar_select %p272, %s269, 1
        %s274 = smul.addr %s271, 2
        %s275 = sadd.s32 %s273, %s274
        %s276 = smul.addr %s275, 4
        %s277 = scalar_lea.vmem %s0, %s276
        %s278 = smul.u32 2, %s24
        %s279 = smul.u32 2, %s24
        %p280 = scmp.lt.s32.totalorder %s23, 1
        %s281 = scalar_select %p280, %s23, 1
        %p282 = scmp.lt.s32.totalorder %s279, 1
        %s283 = scalar_select %p282, %s279, 1
        %s284 = smul.addr %s281, 2
        %s285 = sadd.s32 %s283, %s284
        %s286 = smul.addr %s285, 4
        %s287 = scalar_lea.vmem %s1, %s286
        %s288 = smul.u32 2, %s24
        %s289 = smul.u32 2, %s24
        %v290 = vld [vmem:[%s2] sm:$0xff]
        %v291 = vld [vmem:[%s3] sm:$0xff]
        %v292 = vld [vmem:[%s4] sm:$0xff]
        %v293 = vld [vmem:[%s277] sm:$0xff]
        %v294 = vld [vmem:[%s287] sm:$0xff]
        %v296 = vcombine.high %v294, %v294
        %vm297 = vcmask 31744
        %v299 = vsel %vm297, %v291, 0
        %vm301 = vcmask 1043456
        %v302 = vsel %vm301, %v294, 0
        %v304 = vsel %vm301, %v296, 0
        %306 = vmatprep.subr.mxu0 %v304
        %307 = vmatpush1.msra.mxu0 %v302
        %308 = vmatprep.subr.mxu0 0.0
        %309 = vmatpush1.msra.mxu0 0.0
        %310 = vmatprep.subr.mxu0 0.0
        %311 = vmatpush1.msra.mxu0 0.0
        %312 = vmatprep.subr.mxu0 0.0
        %313 = vmatpush1.msra.mxu0 0.0
        %314 = vmatprep.subr.mxu0 0.0
        %315 = vmatpush1.msra.mxu0 0.0
        %316 = vmatprep.subr.mxu0 0.0
        %317 = vmatpush1.msra.mxu0 0.0
        %318 = vmatprep.subr.mxu0 0.0
        %319 = vmatpush1.msra.mxu0 0.0
        %320 = vmatprep.subr.mxu0 0.0
        %321 = vmatpush1.msra.mxu0 0.0
        %322 = vmatprep.subr.mxu0 0.0
        %323 = vmatpush1.msra.mxu0 0.0
        %324 = vmatprep.subr.mxu0 0.0
        %325 = vmatpush1.msra.mxu0 0.0
        %326 = vmatprep.subr.mxu0 0.0
        %327 = vmatpush1.msra.mxu0 0.0
        %328 = vmatprep.subr.mxu0 0.0
        %329 = vmatpush1.msra.mxu0 0.0
        %330 = vmatprep.subr.mxu0 0.0
        %331 = vmatpush1.msra.mxu0 0.0
        %332 = vmatprep.subr.mxu0 0.0
        %333 = vmatpush1.msra.mxu0 0.0
        %334 = vmatprep.subr.mxu0 0.0
        %335 = vmatpush1.msra.mxu0 0.0
        %336 = vmatprep.subr.mxu0 0.0
        %337 = vmatpush1.msra.mxu0 0.0
        %338 = vmatprep.subr.mxu0 0.0
        %339 = vmatpush1.msra.mxu0 0.0
        %340 = vmatprep.subr.mxu0 0.0
        %341 = vmatpush1.msra.mxu0 0.0
        %342 = vmatprep.subr.mxu0 0.0
        %343 = vmatpush1.msra.mxu0 0.0
        %344 = vmatprep.subr.mxu0 0.0
        %345 = vmatpush1.msra.mxu0 0.0
        %346 = vmatprep.subr.mxu0 0.0
        %347 = vmatpush1.msra.mxu0 0.0
        %348 = vmatprep.subr.mxu0 0.0
        %349 = vmatpush1.msra.mxu0 0.0
        %350 = vmatprep.subr.mxu0 0.0
        %351 = vmatpush1.msra.mxu0 0.0
        %352 = vmatprep.subr.mxu0 0.0
        %353 = vmatpush1.msra.mxu0 0.0
        %354 = vmatprep.subr.mxu0 0.0
        %355 = vmatpush1.msra.mxu0 0.0
        %356 = vmatprep.subr.mxu0 0.0
        %357 = vmatpush1.msra.mxu0 0.0
        %358 = vmatprep.subr.mxu0 0.0
        %359 = vmatpush1.msra.mxu0 0.0
        %360 = vmatprep.subr.mxu0 0.0
        %361 = vmatpush1.msra.mxu0 0.0
        %362 = vmatprep.subr.mxu0 0.0
        %363 = vmatpush1.msra.mxu0 0.0
        %364 = vmatprep.subr.mxu0 0.0
        %365 = vmatpush1.msra.mxu0 0.0
        %366 = vmatprep.subr.mxu0 0.0
        %367 = vmatpush1.msra.mxu0 0.0
        %368 = vmatprep.subr.mxu0 0.0
        %369 = vmatpush1.msra.mxu0 0.0
        %370 = vmatprep.mubr.f32.mxu0 0.0
        %371 = vmatmul.mubr.f32.gmra.mrb[0].mxu0 %v299
        %v372 = vpop.f32.mrb[0].mxu0
        %v373 = vadd.f32 0.0, %v372
        %v374 = vpop.f32.mrb[0].mxu0
        %v375 = vadd.f32 0.0, %v374
        %376 = vdwg.mxu0
        %v378 = vcombine.high %v293, %v293
        %v380 = vsel %vm297, %v290, 0
        %v382 = vsel %vm301, %v293, 0
        %v384 = vsel %vm301, %v378, 0
        %386 = vmatprep.subr.mxu0 %v384
        %387 = vmatpush1.msra.mxu0 %v382
        %388 = vmatprep.subr.mxu0 0.0
        %389 = vmatpush1.msra.mxu0 0.0
        %390 = vmatprep.subr.mxu0 0.0
        %391 = vmatpush1.msra.mxu0 0.0
        %392 = vmatprep.subr.mxu0 0.0
        %393 = vmatpush1.msra.mxu0 0.0
        %394 = vmatprep.subr.mxu0 0.0
        %395 = vmatpush1.msra.mxu0 0.0
        %396 = vmatprep.subr.mxu0 0.0
        %397 = vmatpush1.msra.mxu0 0.0
        %398 = vmatprep.subr.mxu0 0.0
        %399 = vmatpush1.msra.mxu0 0.0
        %400 = vmatprep.subr.mxu0 0.0
        %401 = vmatpush1.msra.mxu0 0.0
        %402 = vmatprep.subr.mxu0 0.0
        %403 = vmatpush1.msra.mxu0 0.0
        %404 = vmatprep.subr.mxu0 0.0
        %405 = vmatpush1.msra.mxu0 0.0
        %406 = vmatprep.subr.mxu0 0.0
        %407 = vmatpush1.msra.mxu0 0.0
        %408 = vmatprep.subr.mxu0 0.0
        %409 = vmatpush1.msra.mxu0 0.0
        %410 = vmatprep.subr.mxu0 0.0
        %411 = vmatpush1.msra.mxu0 0.0
        %412 = vmatprep.subr.mxu0 0.0
        %413 = vmatpush1.msra.mxu0 0.0
        %414 = vmatprep.subr.mxu0 0.0
        %415 = vmatpush1.msra.mxu0 0.0
        %416 = vmatprep.subr.mxu0 0.0
        %417 = vmatpush1.msra.mxu0 0.0
        %418 = vmatprep.subr.mxu0 0.0
        %419 = vmatpush1.msra.mxu0 0.0
        %420 = vmatprep.subr.mxu0 0.0
        %421 = vmatpush1.msra.mxu0 0.0
        %422 = vmatprep.subr.mxu0 0.0
        %423 = vmatpush1.msra.mxu0 0.0
        %424 = vmatprep.subr.mxu0 0.0
        %425 = vmatpush1.msra.mxu0 0.0
        %426 = vmatprep.subr.mxu0 0.0
        %427 = vmatpush1.msra.mxu0 0.0
        %428 = vmatprep.subr.mxu0 0.0
        %429 = vmatpush1.msra.mxu0 0.0
        %430 = vmatprep.subr.mxu0 0.0
        %431 = vmatpush1.msra.mxu0 0.0
        %432 = vmatprep.subr.mxu0 0.0
        %433 = vmatpush1.msra.mxu0 0.0
        %434 = vmatprep.subr.mxu0 0.0
        %435 = vmatpush1.msra.mxu0 0.0
        %436 = vmatprep.subr.mxu0 0.0
        %437 = vmatpush1.msra.mxu0 0.0
        %438 = vmatprep.subr.mxu0 0.0
        %439 = vmatpush1.msra.mxu0 0.0
        %440 = vmatprep.subr.mxu0 0.0
        %441 = vmatpush1.msra.mxu0 0.0
        %442 = vmatprep.subr.mxu0 0.0
        %443 = vmatpush1.msra.mxu0 0.0
        %444 = vmatprep.subr.mxu0 0.0
        %445 = vmatpush1.msra.mxu0 0.0
        %446 = vmatprep.subr.mxu0 0.0
        %447 = vmatpush1.msra.mxu0 0.0
        %448 = vmatprep.subr.mxu0 0.0
        %449 = vmatpush1.msra.mxu0 0.0
        %450 = vmatprep.mubr.f32.mxu0 0.0
        %451 = vmatmul.mubr.f32.gmra.mrb[0].mxu0 %v380
        %v452 = vpop.f32.mrb[0].mxu0
        %v453 = vadd.f32 %v373, %v452
        %v454 = vpop.f32.mrb[0].mxu0
        %v455 = vadd.f32 %v375, %v454
        %456 = vdwg.mxu0
        %458 = vset.pattern.permute.xlu0 0
        %459 = vperm.xlu0 %458, %v292
        %v460 = vpop.permute.xlu0 %459
        %v462 = vadd.f32 %v453, %v460
        %v463 = vadd.f32 %v455, %v460
        %464 = vst [vmem:[%s268] sm:$0xff] %v462
        %465 = vst [vmem:[%s268 + $0x8] sm:$0xff] %v463
        %s466 = sand.u32 %s160, 1
        %s467 = scalar_lea.sflag [#allocation3], %s466
        %s468 = sand.u32 %s160, 1
        %s469 = smul.addr %s468, 16
        %s470 = scalar_lea.vmem [#allocation2], %s469
        // Predicated region
        $region41: #{tpu_custom_call.1} parent=39 // pred_check
          %p471 = pneg %p170
        $region42: #{tpu_custom_call.1} parent=39 // pred_check_branch
          %473 = sbr.rel (%p471) target = $region44
        $region43: #{tpu_custom_call.1} parent=39 // pred_region
          %s474 = smul.u32 2, %s24
          %s476 = ssub.s32 256, 256
          %477 = vsyncadd %s467, %s476
          %s478 = smul.addr %s23, 2
          %s479 = sadd.s32 %s474, %s478
          %s480 = smul.addr %s479, 128
          %s481 = scalar_lea.hbm %s5, %s480
          %s483 = sshll.u32 %s470, 4
          %s484 = int_to_ptr.vmem [resolvable:$true] %s483
          %486 = dma.vmem_to_hbm [thread:$0]  %s484, 256, %s481, %s467
        $region44: #{tpu_custom_call.1} parent=39 // pred_fallthru
          _
      $region40: #{tpu_custom_call.1} parent=5 // pred_fallthru
        _
      %p487 = scmp.le.s32.totalorder 2, %s14
      // Predicated region
      $region45: #{tpu_custom_call.1} parent=5 // pred_check
        %p488 = pneg %p487
      $region46: #{tpu_custom_call.1} parent=5 // pred_check_branch
        %490 = sbr.rel (%p488) target = $region48
      $region47: #{tpu_custom_call.1} parent=5 // pred_region
        %s491 = ssub.s32 %s14, 2
        // Predicated region
        $region49: #{tpu_custom_call.1} parent=47 // pred_check
          %p492 = pneg %p176
        $region50: #{tpu_custom_call.1} parent=47 // pred_check_branch
          %494 = sbr.rel (%p492) target = $region52
        $region51: #{tpu_custom_call.1} parent=47 // pred_region
          %s495 = sand.u32 %s161, 1
          %s496 = scalar_lea.sflag [#allocation3], %s495
          %s497 = sand.u32 %s161, 1
          %s498 = smul.addr %s497, 16
          %s499 = scalar_lea.vmem [#allocation2], %s498
          %500 = dma.done %s496, 256
        $region52: #{tpu_custom_call.1} parent=47 // pred_fallthru
          _
      $region48: #{tpu_custom_call.1} parent=5 // pred_fallthru
        _
    $region6: #{tpu_custom_call.1} parent=1 // loop_footer
      %s18 = sadd.s32 1, %s14
    $region7: #{tpu_custom_call.1} parent=1 // loop_footer_branch
      %13 = sbr.rel target = $region3
    $region8: #{tpu_custom_call.1} parent=1 // loop_exit
      _
    %501 = vsyncpa [#allocation3], 1
    %s502 = scalar_lea.sflag [#allocation3], 1
    %503 = vsyncpa %s502, 1

</llo_original>
